<compile_context>
chip_gen: v5e
topology: v5e:2x2
jax: 0.10.0
libtpu: 0.0.40
codegen_flags: <defaults>
</compile_context>

<pallas_src>
import jax
import jax.numpy as jnp
from jax.experimental import pallas as pl
from jax.experimental.pallas import tpu as pltpu

LANES = 128
MAX_BLOCK_ROWS = 4096        # 4096 x 128 x 4 B = 2 MiB per input block
N_PARALLEL = 2               # v7x has 2 TensorCores; harmless on v5e/v6e


def _make_kernel(rows: int, block_rows: int, needs_mask: bool):
    """Build the kernel. `rows` = number of valid rows in the (rows,128) slab."""

    def kernel(dr_ref, di_ref, o_ref, acc_ref):
        step = pl.program_id(1)

        @pl.when(step == 0)
        def _():
            acc_ref[...] = jnp.zeros_like(acc_ref)

        dr = dr_ref[...]
        di = di_ref[...]
        contrib = dr * dr + di * di          # pure VPU, hidden under the DMA
        if needs_mask:
            # Global block index -> global row index; zero out rows past the
            # end (only the globally last block can overhang the array).
            # Masking the contribution (not the operands) also kills any
            # NaN/Inf garbage read from the out-of-bounds part of the block.
            blk = pl.program_id(0) * pl.num_programs(1) + step
            row = jax.lax.broadcasted_iota(jnp.int32, (block_rows, LANES), 0)
            contrib = jnp.where(blk * block_rows + row < rows, contrib, 0.0)
        acc_ref[...] += contrib              # no per-step cross-lane reduce

        @pl.when(step == pl.num_programs(1) - 1)
        def _():
            total = jnp.sum(acc_ref[...])    # single XLU reduce per chunk
            r = jax.lax.broadcasted_iota(jnp.int32, (1, 8, LANES), 1)
            c = jax.lax.broadcasted_iota(jnp.int32, (1, 8, LANES), 2)
            # Lane-dense (1, 8, 128) output block; partial sum lives at
            # [0,0,0], everything else is 0 so the wrapper can just jnp.sum.
            o_ref[...] = jnp.where((r == 0) & (c == 0), total, 0.0)

    return kernel


@jax.jit
def complex_mse_loss(inputs: jax.Array, targets: jax.Array) -> jax.Array:
    """Pallas implementation of ComplexMSELoss.forward.

    inputs/targets: complex64 arrays of identical shape. Returns f32 scalar.
    """
    assert inputs.shape == targets.shape
    n_complex = inputs.size

    # TODO(synk): replace with a zero-copy complex64->f32 reinterpret once
    # XLA/Pallas support bitcasting complex dtypes; until then this single
    # fused elementwise pass (extraction + subtraction) is the minimum.
    dr = (jnp.real(inputs) - jnp.real(targets)).astype(jnp.float32).reshape(-1)
    di = (jnp.imag(inputs) - jnp.imag(targets)).astype(jnp.float32).reshape(-1)

    # Lane pad (< 128 zeros) only when needed; zero pad contributes 0.
    pad = (-n_complex) % LANES
    if pad:
        dr = jnp.pad(dr, (0, pad))
        di = jnp.pad(di, (0, pad))
    rows = (n_complex + pad) // LANES
    dr = dr.reshape(rows, LANES)
    di = di.reshape(rows, LANES)

    # Row-block sizing: one block if it all fits, else 4096-row blocks with an
    # in-kernel mask for the ragged last block (no full-array padding copy).
    if rows <= MAX_BLOCK_ROWS:
        block_rows = rows
        n_blocks = 1
    else:
        block_rows = MAX_BLOCK_ROWS
        n_blocks = pl.cdiv(rows, block_rows)
    needs_mask = (n_blocks * block_rows != rows)

    # Split the block sweep across parallel chunks (2 TCs on v7x) when the
    # block count divides evenly; otherwise run a single chunk.
    n_par = N_PARALLEL if (n_blocks % N_PARALLEL == 0) else 1
    steps = n_blocks // n_par

    in_spec = pl.BlockSpec((block_rows, LANES),
                           lambda c, i: (c * steps + i, 0))

    out = pl.pallas_call(
        _make_kernel(rows, block_rows, needs_mask),
        out_shape=jax.ShapeDtypeStruct((n_par, 8, LANES), jnp.float32),
        grid_spec=pltpu.PrefetchScalarGridSpec(
            num_scalar_prefetch=0,
            grid=(n_par, steps),
            in_specs=[in_spec, in_spec],
            out_specs=pl.BlockSpec((1, 8, LANES), lambda c, i: (c, 0, 0)),
            scratch_shapes=[pltpu.VMEM((block_rows, LANES), jnp.float32)],
        ),
        compiler_params=pltpu.CompilerParams(
            dimension_semantics=("parallel", "arbitrary")),
    )(dr, di)

    # Per-chunk partial sums live at out[c, 0, 0]; all other entries are 0.
    # (sum_re + sum_im) / N  ==  mean_re + mean_im.
    return jnp.sum(out) * jnp.float32(1.0 / n_complex)


if __name__ == "__main__":
    key = jax.random.PRNGKey(0)
    k1, k2, k3, k4 = jax.random.split(key, 4)
    shape = (2, 4, 16, 16)

    inputs = (jax.random.normal(k1, shape, jnp.float32)
              + 1j * jax.random.normal(k2, shape, jnp.float32)).astype(jnp.complex64)
    targets = (jax.random.normal(k3, shape, jnp.float32)
               + 1j * jax.random.normal(k4, shape, jnp.float32)).astype(jnp.complex64)

    loss = complex_mse_loss(inputs, targets)
    jax.block_until_ready(loss)

    # Pure-JAX reference check.
    ref = (jnp.mean((jnp.real(inputs) - jnp.real(targets)) ** 2)
           + jnp.mean((jnp.imag(inputs) - jnp.imag(targets)) ** 2))
    assert jnp.allclose(loss, ref, rtol=1e-5, atol=1e-5), (loss, ref)

    print("KERNEL_OK")
</pallas_src>

<mosaic_0001>
module attributes {stable_mosaic.version = 11 : i64} {
  func.func @kernel(%arg0: i32, %arg1: i32, %arg2: memref<16x128xf32, #tpu.memory_space<vmem>>, %arg3: memref<16x128xf32, #tpu.memory_space<vmem>>, %arg4: memref<1x8x128xf32, #tpu.memory_space<vmem>>, %arg5: memref<16x128xf32, #tpu.memory_space<vmem>>) attributes {dimension_semantics = [#tpu.dimension_semantics<parallel>, #tpu.dimension_semantics<arbitrary>], iteration_bounds = array<i64: 1, 1>, scalar_prefetch = 0 : i64, scratch_operands = 1 : i64, tpu.core_type = #tpu.core_type<tc>, window_params = [{transform_indices = @transform_0, window_bounds = array<i64: 16, 128>}, {transform_indices = @transform_1, window_bounds = array<i64: 16, 128>}, {transform_indices = @transform_2, window_bounds = array<i64: 1, 8, 128>}]} {
    %c0_i32 = arith.constant 0 : i32
    %0 = arith.cmpi eq, %arg1, %c0_i32 : i32
    %1 = arith.extui %0 : i1 to i32
    %c0_i32_0 = arith.constant 0 : i32
    %2 = arith.cmpi ne, %1, %c0_i32_0 : i32
    scf.if %2 {
      %cst = arith.constant 0.000000e+00 : f32
      %14 = vector.broadcast %cst : f32 to vector<16x128xf32>
      %c0_10 = arith.constant 0 : index
      %c0_11 = arith.constant 0 : index
      %15 = vector.load %arg5[%c0_10, %c0_11] : memref<16x128xf32, #tpu.memory_space<vmem>>, vector<16x128xf32>
      tpu.vector_store %arg5[%c0_10, %c0_11], %14 {strides = array<i32>} : memref<16x128xf32, #tpu.memory_space<vmem>>, vector<16x128xf32>,
    } else {
    }
    %c0 = arith.constant 0 : index
    %c0_1 = arith.constant 0 : index
    %3 = vector.load %arg2[%c0, %c0_1] : memref<16x128xf32, #tpu.memory_space<vmem>>, vector<16x128xf32>
    %c0_2 = arith.constant 0 : index
    %c0_3 = arith.constant 0 : index
    %4 = vector.load %arg3[%c0_2, %c0_3] : memref<16x128xf32, #tpu.memory_space<vmem>>, vector<16x128xf32>
    %5 = arith.mulf %3, %3 : vector<16x128xf32>
    %6 = arith.mulf %4, %4 : vector<16x128xf32>
    %7 = arith.addf %5, %6 : vector<16x128xf32>
    %c0_4 = arith.constant 0 : index
    %c0_5 = arith.constant 0 : index
    %8 = vector.load %arg5[%c0_4, %c0_5] : memref<16x128xf32, #tpu.memory_space<vmem>>, vector<16x128xf32>
    %9 = arith.addf %8, %7 : vector<16x128xf32>
    %c0_6 = arith.constant 0 : index
    %c0_7 = arith.constant 0 : index
    %10 = vector.load %arg5[%c0_6, %c0_7] : memref<16x128xf32, #tpu.memory_space<vmem>>, vector<16x128xf32>
    tpu.vector_store %arg5[%c0_6, %c0_7], %9 {strides = array<i32>} : memref<16x128xf32, #tpu.memory_space<vmem>>, vector<16x128xf32>,
    %c0_i32_8 = arith.constant 0 : i32
    %11 = arith.cmpi eq, %arg1, %c0_i32_8 : i32
    %12 = arith.extui %11 : i1 to i32
    %c0_i32_9 = arith.constant 0 : i32
    %13 = arith.cmpi ne, %12, %c0_i32_9 : i32
    scf.if %13 {
      %c0_10 = arith.constant 0 : index
      %c0_11 = arith.constant 0 : index
      %14 = vector.load %arg5[%c0_10, %c0_11] : memref<16x128xf32, #tpu.memory_space<vmem>>, vector<16x128xf32>
      %15 = vector.shape_cast %14 : vector<16x128xf32> to vector<1x16x128xf32>
      %cst = arith.constant dense<0.000000e+00> : vector<1xf32>
      %16 = vector.multi_reduction <add>, %15, %cst [1, 2] : vector<1x16x128xf32> to vector<1xf32>
      %17 = vector.shape_cast %16 : vector<1xf32> to vector<1x1x1xf32>
      %18 = vector.extract %17[0, 0, 0] : f32 from vector<1x1x1xf32>
      %19 = tpu.iota {dimensions = array<i32: 1>} : vector<1x8x128xi32>
      %20 = tpu.iota {dimensions = array<i32: 2>} : vector<1x8x128xi32>
      %c0_i32_12 = arith.constant 0 : i32
      %21 = vector.broadcast %c0_i32_12 : i32 to vector<1x8x128xi32>
      %22 = arith.cmpi eq, %19, %21 : vector<1x8x128xi32>
      %c0_i32_13 = arith.constant 0 : i32
      %23 = vector.broadcast %c0_i32_13 : i32 to vector<1x8x128xi32>
      %24 = arith.cmpi eq, %20, %23 : vector<1x8x128xi32>
      %25 = arith.andi %22, %24 : vector<1x8x128xi1>
      %cst_14 = arith.constant 0.000000e+00 : f32
      %26 = vector.broadcast %18 : f32 to vector<1x8x128xf32>
      %27 = vector.broadcast %cst_14 : f32 to vector<1x8x128xf32>
      %28 = arith.select %25, %26, %27 : vector<1x8x128xi1>, vector<1x8x128xf32>
      %c0_15 = arith.constant 0 : index
      %c0_16 = arith.constant 0 : index
      %c0_17 = arith.constant 0 : index
      %29 = vector.load %arg4[%c0_15, %c0_16, %c0_17] : memref<1x8x128xf32, #tpu.memory_space<vmem>>, vector<1x8x128xf32>
      tpu.vector_store %arg4[%c0_15, %c0_16, %c0_17], %28 {strides = array<i32>} : memref<1x8x128xf32, #tpu.memory_space<vmem>>, vector<1x8x128xf32>,
    } else {
    }
    return
  }
  func.func @transform_0(%arg0: i32, %arg1: i32) -> (i32, i32) {
    %c1_i32 = arith.constant 1 : i32
    %0 = arith.muli %arg0, %c1_i32 : i32
    %1 = arith.addi %0, %arg1 : i32
    %c0_i32 = arith.constant 0 : i32
    %c0_i32_0 = arith.constant 0 : i32
    return %1, %c0_i32 : i32, i32
  }
  func.func @transform_1(%arg0: i32, %arg1: i32) -> (i32, i32) {
    %c1_i32 = arith.constant 1 : i32
    %0 = arith.muli %arg0, %c1_i32 : i32
    %1 = arith.addi %0, %arg1 : i32
    %c0_i32 = arith.constant 0 : i32
    %c0_i32_0 = arith.constant 0 : i32
    return %1, %c0_i32 : i32, i32
  }
  func.func @transform_2(%arg0: i32, %arg1: i32) -> (i32, i32, i32) {
    %c0_i32 = arith.constant 0 : i32
    %c0_i32_0 = arith.constant 0 : i32
    %c0_i32_1 = arith.constant 0 : i32
    return %arg0, %c0_i32, %c0_i32_0 : i32, i32, i32
  }
}

</mosaic_0001>

<llo_original>
// kernel: custom-call.1
$region0: #{custom-call.1}
  %s0 = inlined_call_operand.hbm [shape: c64[2,4,16,16], index: 0, kind: input, shape index: {}]
  %s1 = inlined_call_operand.vmem [shape: f32[2,4,16,16], index: 1, kind: output, shape index: {}]
  %s2 = scalar_lea.hbm %s0, 128
  $region1: #{custom-call.1} parent=0
    #allocation0 [shape = 's32[1]{0}', space=sflag, size = 0x4, scoped, tag = 'scoped memory for custom-call.1']
    %3 = vsyncpa [#allocation0], 0
    %s5 = sshll.u32 %s2, 4
    %s6 = int_to_ptr.hbm [resolvable:$true] %s5
    %s7 = sshll.u32 %s1, 4
    %s8 = int_to_ptr.vmem [resolvable:$true] %s7
    %10 = dma.hbm_to_vmem [thread:$0]  %s6, 2048, %s8, [#allocation0]
    %12 = dma.done [#allocation0], 2048
    %13 = vsyncpa [#allocation0], 1

// kernel: custom-call
$region0: #{custom-call}
  %s0 = inlined_call_operand.hbm [shape: c64[2,4,16,16], index: 0, kind: input, shape index: {}]
  %s1 = inlined_call_operand.vmem [shape: f32[2,4,16,16], index: 1, kind: output, shape index: {}]
  $region1: #{custom-call} parent=0
    #allocation0 [shape = 's32[1]{0}', space=sflag, size = 0x4, scoped, tag = 'scoped memory for custom-call']
    %2 = vsyncpa [#allocation0], 0
    %s4 = sshll.u32 %s0, 4
    %s5 = int_to_ptr.hbm [resolvable:$true] %s4
    %s6 = sshll.u32 %s1, 4
    %s7 = int_to_ptr.vmem [resolvable:$true] %s6
    %9 = dma.hbm_to_vmem [thread:$0]  %s5, 2048, %s7, [#allocation0]
    %11 = dma.done [#allocation0], 2048
    %12 = vsyncpa [#allocation0], 1

// kernel: sub.2
$region0: #{sub.2}
  #allocation0 [shape = 's32[1]{0}', space=sflag, size = 0x4, scoped, tag = 'scoped memory for sub.2']
  %s0 = inlined_call_operand.vmem [shape: f32[2,4,16,16], index: 0, kind: input, shape index: {}]
  %s1 = inlined_call_operand.vmem [shape: f32[2,4,16,16], index: 1, kind: input, shape index: {}]
  %s2 = inlined_call_operand.vmem [shape: f32[2,4,16,16], index: 2, kind: output, shape index: {}]
  %v3 = vld [vmem:[%s0] sm:$0xff]
  %v4 = vld [vmem:[%s1] sm:$0xff]
  %5 = xla_tuple %v3, %v4
  %6 = xla_tuple %5
  %v7 = vsub.f32 %v3, %v4
  %8 = xla_tuple %v7
  %9 = vst [vmem:[%s2] sm:$0xff] %v7
  %s10 = scalar_lea.vmem %s0, 64
  %v11 = vld [vmem:[%s10] sm:$0xff]
  %s12 = scalar_lea.vmem %s1, 64
  %v13 = vld [vmem:[%s12] sm:$0xff]
  %14 = xla_tuple %v11, %v13
  %15 = xla_tuple %14
  %v16 = vsub.f32 %v11, %v13
  %17 = xla_tuple %v16
  %s18 = scalar_lea.vmem %s2, 64
  %19 = vst [vmem:[%s18] sm:$0xff] %v16
  %s20 = scalar_lea.vmem %s0, 16
  %v21 = vld [vmem:[%s20] sm:$0xff]
  %s22 = scalar_lea.vmem %s1, 16
  %v23 = vld [vmem:[%s22] sm:$0xff]
  %24 = xla_tuple %v21, %v23
  %25 = xla_tuple %24
  %v26 = vsub.f32 %v21, %v23
  %27 = xla_tuple %v26
  %s28 = scalar_lea.vmem %s2, 16
  %29 = vst [vmem:[%s28] sm:$0xff] %v26
  %s30 = scalar_lea.vmem %s0, 80
  %v31 = vld [vmem:[%s30] sm:$0xff]
  %s32 = scalar_lea.vmem %s1, 80
  %v33 = vld [vmem:[%s32] sm:$0xff]
  %34 = xla_tuple %v31, %v33
  %35 = xla_tuple %34
  %v36 = vsub.f32 %v31, %v33
  %37 = xla_tuple %v36
  %s38 = scalar_lea.vmem %s2, 80
  %39 = vst [vmem:[%s38] sm:$0xff] %v36
  %s40 = scalar_lea.vmem %s0, 32
  %v41 = vld [vmem:[%s40] sm:$0xff]
  %s42 = scalar_lea.vmem %s1, 32
  %v43 = vld [vmem:[%s42] sm:$0xff]
  %44 = xla_tuple %v41, %v43
  %45 = xla_tuple %44
  %v46 = vsub.f32 %v41, %v43
  %47 = xla_tuple %v46
  %s48 = scalar_lea.vmem %s2, 32
  %49 = vst [vmem:[%s48] sm:$0xff] %v46
  %s50 = scalar_lea.vmem %s0, 96
  %v51 = vld [vmem:[%s50] sm:$0xff]
  %s52 = scalar_lea.vmem %s1, 96
  %v53 = vld [vmem:[%s52] sm:$0xff]
  %54 = xla_tuple %v51, %v53
  %55 = xla_tuple %54
  %v56 = vsub.f32 %v51, %v53
  %57 = xla_tuple %v56
  %s58 = scalar_lea.vmem %s2, 96
  %59 = vst [vmem:[%s58] sm:$0xff] %v56
  %s60 = scalar_lea.vmem %s0, 48
  %v61 = vld [vmem:[%s60] sm:$0xff]
  %s62 = scalar_lea.vmem %s1, 48
  %v63 = vld [vmem:[%s62] sm:$0xff]
  %64 = xla_tuple %v61, %v63
  %65 = xla_tuple %64
  %v66 = vsub.f32 %v61, %v63
  %67 = xla_tuple %v66
  %s68 = scalar_lea.vmem %s2, 48
  %69 = vst [vmem:[%s68] sm:$0xff] %v66
  %s70 = scalar_lea.vmem %s0, 112
  %v71 = vld [vmem:[%s70] sm:$0xff]
  %s72 = scalar_lea.vmem %s1, 112
  %v73 = vld [vmem:[%s72] sm:$0xff]
  %74 = xla_tuple %v71, %v73
  %75 = xla_tuple %74
  %v76 = vsub.f32 %v71, %v73
  %77 = xla_tuple %v76
  %s78 = scalar_lea.vmem %s2, 112
  %79 = vst [vmem:[%s78] sm:$0xff] %v76
  %s80 = scalar_lea.vmem %s0, 8
  %v81 = vld [vmem:[%s80] sm:$0xff]
  %s82 = scalar_lea.vmem %s1, 8
  %v83 = vld [vmem:[%s82] sm:$0xff]
  %84 = xla_tuple %v81, %v83
  %85 = xla_tuple %84
  %v86 = vsub.f32 %v81, %v83
  %87 = xla_tuple %v86
  %s88 = scalar_lea.vmem %s2, 8
  %89 = vst [vmem:[%s88] sm:$0xff] %v86
  %s90 = scalar_lea.vmem %s0, 72
  %v91 = vld [vmem:[%s90] sm:$0xff]
  %s92 = scalar_lea.vmem %s1, 72
  %v93 = vld [vmem:[%s92] sm:$0xff]
  %94 = xla_tuple %v91, %v93
  %95 = xla_tuple %94
  %v96 = vsub.f32 %v91, %v93
  %97 = xla_tuple %v96
  %s98 = scalar_lea.vmem %s2, 72
  %99 = vst [vmem:[%s98] sm:$0xff] %v96
  %s100 = scalar_lea.vmem %s0, 24
  %v101 = vld [vmem:[%s100] sm:$0xff]
  %s102 = scalar_lea.vmem %s1, 24
  %v103 = vld [vmem:[%s102] sm:$0xff]
  %104 = xla_tuple %v101, %v103
  %105 = xla_tuple %104
  %v106 = vsub.f32 %v101, %v103
  %107 = xla_tuple %v106
  %s108 = scalar_lea.vmem %s2, 24
  %109 = vst [vmem:[%s108] sm:$0xff] %v106
  %s110 = scalar_lea.vmem %s0, 88
  %v111 = vld [vmem:[%s110] sm:$0xff]
  %s112 = scalar_lea.vmem %s1, 88
  %v113 = vld [vmem:[%s112] sm:$0xff]
  %114 = xla_tuple %v111, %v113
  %115 = xla_tuple %114
  %v116 = vsub.f32 %v111, %v113
  %117 = xla_tuple %v116
  %s118 = scalar_lea.vmem %s2, 88
  %119 = vst [vmem:[%s118] sm:$0xff] %v116
  %s120 = scalar_lea.vmem %s0, 40
  %v121 = vld [vmem:[%s120] sm:$0xff]
  %s122 = scalar_lea.vmem %s1, 40
  %v123 = vld [vmem:[%s122] sm:$0xff]
  %124 = xla_tuple %v121, %v123
  %125 = xla_tuple %124
  %v126 = vsub.f32 %v121, %v123
  %127 = xla_tuple %v126
  %s128 = scalar_lea.vmem %s2, 40
  %129 = vst [vmem:[%s128] sm:$0xff] %v126
  %s130 = scalar_lea.vmem %s0, 104
  %v131 = vld [vmem:[%s130] sm:$0xff]
  %s132 = scalar_lea.vmem %s1, 104
  %v133 = vld [vmem:[%s132] sm:$0xff]
  %134 = xla_tuple %v131, %v133
  %135 = xla_tuple %134
  %v136 = vsub.f32 %v131, %v133
  %137 = xla_tuple %v136
  %s138 = scalar_lea.vmem %s2, 104
  %139 = vst [vmem:[%s138] sm:$0xff] %v136
  %s140 = scalar_lea.vmem %s0, 56
  %v141 = vld [vmem:[%s140] sm:$0xff]
  %s142 = scalar_lea.vmem %s1, 56
  %v143 = vld [vmem:[%s142] sm:$0xff]
  %144 = xla_tuple %v141, %v143
  %145 = xla_tuple %144
  %v146 = vsub.f32 %v141, %v143
  %147 = xla_tuple %v146
  %s148 = scalar_lea.vmem %s2, 56
  %149 = vst [vmem:[%s148] sm:$0xff] %v146
  %s150 = scalar_lea.vmem %s0, 120
  %v151 = vld [vmem:[%s150] sm:$0xff]
  %s152 = scalar_lea.vmem %s1, 120
  %v153 = vld [vmem:[%s152] sm:$0xff]
  %154 = xla_tuple %v151, %v153
  %155 = xla_tuple %154
  %v156 = vsub.f32 %v151, %v153
  %157 = xla_tuple %v156
  %s158 = scalar_lea.vmem %s2, 120
  %159 = vst [vmem:[%s158] sm:$0xff] %v156

// kernel: complex_mse_loss.1
$region0: #{complex_mse_loss.1}
  #allocation0 [shape = 'u32[]', space=smem, size = 0x4, offset = 0x4, fixed_abs, tag = 'smem constant byte address 0x4 - core index']
  #allocation1 [shape = 'u32[72,128]{1,0:T(1,128)}', space=vmem, size = 0x9000, scoped, tag = 'internal scratch']
  #allocation2 [shape = 'f32[16,128]{1,0:T(8,128)}', space=vmem, size = 0x2000, scoped, tag = 'scratch operand']
  %s0 = inlined_call_operand.vmem [shape: f32[16,128], index: 0, kind: input, shape index: {}]
  %s1 = inlined_call_operand.vmem [shape: f32[16,128], index: 1, kind: input, shape index: {}]
  %s2 = inlined_call_operand.vmem [shape: f32[1,8,128], index: 2, kind: output, shape index: {}]
  %s3 = sld [smem:[#allocation0]]
  $region26: #{complex_mse_loss.1} parent=0
    _
  %s5 = ssub.s32 1, %s3
  %s6 = scalar_select 0, %s5, %s3
  // Predicated region
  $region2: #{complex_mse_loss.1} parent=0 // pred_check
    _
  $region3: #{complex_mse_loss.1} parent=0 // pred_check_branch
    %8 = sbr.rel (0) target = $region5
  $region4: #{complex_mse_loss.1} parent=0 // pred_region
    %s9 = sadd.s32 0, 0
    %s10 = smul.u32 2, %s9
    %p11 = scmp.lt.s32.totalorder %s10, 1
    %s12 = scalar_select %p11, %s10, 1
    %s13 = smul.addr %s12, 8
    %s14 = scalar_lea.vmem %s0, %s13
    %s15 = sadd.s32 0, 0
    %s16 = smul.u32 2, %s15
  $region5: #{complex_mse_loss.1} parent=0 // pred_fallthru
    _
  // Predicated region
  $region6: #{complex_mse_loss.1} parent=0 // pred_check
    _
  $region7: #{complex_mse_loss.1} parent=0 // pred_check_branch
    %18 = sbr.rel (0) target = $region9
  $region8: #{complex_mse_loss.1} parent=0 // pred_region
    %s19 = sadd.s32 0, 0
    %s20 = smul.u32 2, %s19
    %p21 = scmp.lt.s32.totalorder %s20, 1
    %s22 = scalar_select %p21, %s20, 1
    %s23 = smul.addr %s22, 8
    %s24 = scalar_lea.vmem %s1, %s23
    %s25 = sadd.s32 0, 0
    %s26 = smul.u32 2, %s25
  $region9: #{complex_mse_loss.1} parent=0 // pred_fallthru
    _
  %s27 = sadd.s32 0, 0
  %s28 = smul.u32 2, %s27
  %p29 = scmp.lt.s32.totalorder %s28, 1
  %s30 = scalar_select %p29, %s28, 1
  %s31 = smul.addr %s30, 8
  %s32 = scalar_lea.vmem %s0, %s31
  %s33 = sadd.s32 0, 0
  %s34 = smul.u32 2, %s33
  %p35 = scmp.lt.s32.totalorder %s34, 1
  %s36 = scalar_select %p35, %s34, 1
  %s37 = smul.addr %s36, 8
  %s38 = scalar_lea.vmem %s1, %s37
  %s39 = sadd.s32 0, 0
  %s40 = smul.u32 2, %s39
  %p41 = scmp.lt.s32.totalorder %s40, 1
  %s42 = scalar_select %p41, %s40, 1
  %s43 = smul.addr %s42, 8
  %s44 = scalar_lea.vmem %s0, %s43
  %s45 = sadd.s32 0, 0
  %s46 = smul.u32 2, %s45
  %s47 = sadd.s32 0, 0
  %s48 = smul.u32 2, %s47
  %p49 = scmp.lt.s32.totalorder %s48, 1
  %s50 = scalar_select %p49, %s48, 1
  %s51 = smul.addr %s50, 8
  %s52 = scalar_lea.vmem %s1, %s51
  %s53 = sadd.s32 0, 0
  %s54 = smul.u32 2, %s53
  %p55 = scmp.eq.s32.totalorder 0, 0
  // Predicated region
  $region10: #{complex_mse_loss.1} parent=0 // pred_check
    %p56 = pneg %p55
  $region11: #{complex_mse_loss.1} parent=0 // pred_check_branch
    %58 = sbr.rel (%p56) target = $region13
  $region12: #{complex_mse_loss.1} parent=0 // pred_region
    %59 = vst [vmem:[#allocation2] sm:$0xff] 0.0
    %60 = vst [vmem:[#allocation2 + $0x8] sm:$0xff] 0.0
  $region13: #{complex_mse_loss.1} parent=0 // pred_fallthru
    _
  %v61 = vld [vmem:[%s44] sm:$0xff]
  %v62 = vld [vmem:[%s44 + $0x8] sm:$0xff]
  %v63 = vld [vmem:[%s52] sm:$0xff]
  %v64 = vld [vmem:[%s52 + $0x8] sm:$0xff]
  %v65 = vmul.f32 %v61, %v61
  %v66 = vmul.f32 %v62, %v62
  %v67 = vmul.f32 %v63, %v63
  %v68 = vmul.f32 %v64, %v64
  %v69 = vadd.f32 %v65, %v67
  %v70 = vadd.f32 %v66, %v68
  %v71 = vld [vmem:[#allocation2] sm:$0xff]
  %v72 = vld [vmem:[#allocation2 + $0x8] sm:$0xff]
  %v73 = vadd.f32 %v71, %v69
  %v74 = vadd.f32 %v72, %v70
  %75 = vst [vmem:[#allocation2] sm:$0xff] %v73
  %76 = vst [vmem:[#allocation2 + $0x8] sm:$0xff] %v74
  // Predicated region
  $region14: #{complex_mse_loss.1} parent=0 // pred_check
    %p77 = pneg %p55
  $region15: #{complex_mse_loss.1} parent=0 // pred_check_branch
    %79 = sbr.rel (%p77) target = $region17
  $region16: #{complex_mse_loss.1} parent=0 // pred_region
    %v80 = vld [vmem:[#allocation2] sm:$0xff]
    %v81 = vld [vmem:[#allocation2 + $0x8] sm:$0xff]
    %v82 = vadd.f32 %v80, %v81
    %83 = vadd.xlane.f32.xlu0 %v82
    %v84 = vpop.xlane.xlu0 %83
    %v85 = vrot.slane %v84, 4
    %v86 = vadd.f32 %v84, %v85
    %v87 = vrot.slane %v86, 2
    %v88 = vadd.f32 %v86, %v87
    %v89 = vrot.slane %v88, 1
    %v90 = vadd.f32 %v88, %v89
    %s91 = vtos %v90
    %v92 = vlaneseq
    %v93 = vshrl.u32 %v92, 7
    %v94 = vlaneseq
    %v95 = vand.u32 %v94, 127
    %vm96 = vcmp.eq.s32.totalorder %v93, 0
    %vm97 = vcmp.eq.s32.totalorder %v95, 0
    %vm98 = vmand %vm96, %vm97
    %v99 = vstv %s91
    %v100 = vsel %vm98, %v99, 0.0
    %101 = vst [vmem:[%s2] sm:$0xff] %v100
  $region17: #{complex_mse_loss.1} parent=0 // pred_fallthru
    _
  // Predicated region
  $region18: #{complex_mse_loss.1} parent=0 // pred_check
    _
  $region19: #{complex_mse_loss.1} parent=0 // pred_check_branch
    %103 = sbr.rel (0) target = $region21
  $region20: #{complex_mse_loss.1} parent=0 // pred_region
    _
  $region21: #{complex_mse_loss.1} parent=0 // pred_fallthru
    _
  // Predicated region
  $region22: #{complex_mse_loss.1} parent=0 // pred_check
    _
  $region23: #{complex_mse_loss.1} parent=0 // pred_check_branch
    %105 = sbr.rel (0) target = $region25
  $region24: #{complex_mse_loss.1} parent=0 // pred_region
    _
  $region25: #{complex_mse_loss.1} parent=0 // pred_fallthru
    _

</llo_original>
